<compile_context>
chip_gen: v6e
topology: v6e:2x2x1
jax: 0.10.0
libtpu: 0.0.40
codegen_flags: <defaults>
</compile_context>

<pallas_src>
import jax
import jax.numpy as jnp
from jax import lax
from jax.experimental import pallas as pl
from jax.experimental.pallas import tpu as pltpu

BN_EPS = 1e-5


def reslt_kernel(x_ref, wb_ref, w1s_ref, b1s_ref, wfct_ref, bfc3_ref,
                 out_ref, pool_acc):
    # x_ref   : (Cin, S_TILE)  spatial slice of one image (channels on sublanes,
    #                          spatial on lanes; no host transpose needed)
    # wb_ref  : (C, Cin)       backbone stand-in 1x1 conv weight (torch layout)
    # w1s_ref : (3, C, C)      finalBlock conv weight per branch, BN scale and 1/HW
    #                          folded in, transposed for row-vector matmul
    # b1s_ref : (3, 1, C)      folded BN bias per branch
    # wfct_ref: (C, NC_PAD)    fc weight^T, classes zero-padded to a lane multiple
    # bfc3_ref: (1, NC_PAD)    3 * fc bias (the three branches share the fc)
    # out_ref : (1, NC_PAD)    logits row for this batch element
    # pool_acc: (1, C) VMEM    running spatial sum of backbone features
    s = pl.program_id(1)
    n_s = pl.num_programs(1)

    @pl.when(s == 0)
    def _init():
        pool_acc[...] = jnp.zeros_like(pool_acc)

    # Backbone stand-in: pointwise conv + ReLU.  Lane axis = spatial (dense).
    feats = jnp.maximum(
        jnp.dot(wb_ref[...], x_ref[...], preferred_element_type=jnp.float32),
        0.0)                                                       # (C, S_TILE)

    # Partial global-average-pool: ones-row . feats^T (rhs-transposed MXU dot).
    # Same arithmetic as a lane reduce, but the result lands directly as a row
    # vector (1, C), so the rest of the chain needs no transposes.  1/HW is
    # folded into w1s on the host.
    ones_row = jnp.ones((1, feats.shape[1]), jnp.float32)
    pool_acc[...] += lax.dot_general(
        ones_row, feats,
        dimension_numbers=(((1,), (1,)), ((), ())),
        preferred_element_type=jnp.float32)                        # (1, C)

    @pl.when(s == n_s - 1)
    def _finalize():
        p = pool_acc[...]                                          # (1, C)
        # finalBlock per branch: conv1x1 (BN + 1/HW folded in) -> ReLU, then sum
        # the branches; the shared fc is applied once to the sum.
        y0 = jnp.maximum(jnp.dot(p, w1s_ref[0],
                                 preferred_element_type=jnp.float32) + b1s_ref[0], 0.0)
        y1 = jnp.maximum(jnp.dot(p, w1s_ref[1],
                                 preferred_element_type=jnp.float32) + b1s_ref[1], 0.0)
        y2 = jnp.maximum(jnp.dot(p, w1s_ref[2],
                                 preferred_element_type=jnp.float32) + b1s_ref[2], 0.0)
        ysum = y0 + y1 + y2                                        # (1, C)
        out_ref[...] = jnp.dot(ysum, wfct_ref[...],
                               preferred_element_type=jnp.float32) + bfc3_ref[...]


def _pick_spatial_tile(hw, requested):
    if requested is not None and 0 < requested <= hw and hw % requested == 0:
        return requested
    # Prefer large, 128-aligned tiles (per-grid-step overhead ~0.35us; mem-bound
    # roofline wants big DMAs); small feature maps are processed whole.
    for t in (1024, 512, 256, 128):
        if hw % t == 0:
            return t
    return hw


def reslt_forward(x_nchw, params, *, spatial_tile=None, compute_dtype=jnp.float32):
    """ResLT eval forward.  x_nchw: (B, Cin, H, W) float32.

    compute_dtype=jnp.bfloat16 is the recommended deployment setting (halves the
    HBM bytes of the dominant backbone matmul); accumulation stays f32.
    """
    B, Cin, H, W = x_nchw.shape
    C = params["wb_oc"].shape[0]          # feature_dim
    nc = params["wfc"].shape[0]           # num_classes
    HW = H * W
    st = _pick_spatial_tile(HW, spatial_tile)
    n_s = HW // st
    nc_pad = ((nc + 127) // 128) * 128    # lane-dense output store

    # Free reshape only (no NCHW->NHWC transpose => no extra HBM pass over x).
    x3 = x_nchw.reshape(B, Cin, HW).astype(compute_dtype)
    wb = params["wb_oc"].astype(compute_dtype)                           # (C, Cin)

    # Fold BatchNorm (eval) and the 1/HW pooling scale into the finalBlock conv;
    # split into the three per-branch (C, C) blocks (transposed for row matmul).
    scale = params["gamma"] * lax.rsqrt(params["running_var"] + BN_EPS)  # (3C,)
    w1_folded = params["w1_oc"] * scale[:, None] / HW                    # (3C, C)
    w1s = w1_folded.reshape(3, C, C).transpose(0, 2, 1)                  # (3, C, C)
    b1s = (params["beta"] - params["running_mean"] * scale).reshape(3, 1, C)

    # Single fc applied to the branch sum; classes padded to a multiple of 128.
    wfct = jnp.zeros((C, nc_pad), jnp.float32).at[:, :nc].set(params["wfc"].T)
    bfc3 = jnp.zeros((1, nc_pad), jnp.float32).at[:, :nc].set(3.0 * params["bfc"])

    vmem = pl.BlockSpec(memory_space=pltpu.MemorySpace.VMEM)   # resident small weights
    out = pl.pallas_call(
        reslt_kernel,
        out_shape=jax.ShapeDtypeStruct((B, 1, nc_pad), jnp.float32),
        grid_spec=pltpu.PrefetchScalarGridSpec(
            num_scalar_prefetch=0,
            grid=(B, n_s),
            in_specs=[
                pl.BlockSpec((None, Cin, st), lambda b, s: (b, 0, s)),   # x tile
                vmem,   # wb
                vmem,   # w1s
                vmem,   # b1s
                vmem,   # wfct
                vmem,   # bfc3
            ],
            out_specs=pl.BlockSpec((None, 1, nc_pad), lambda b, s: (b, 0, 0)),
            scratch_shapes=[pltpu.VMEM((1, C), jnp.float32)],
        ),
        compiler_params=pltpu.CompilerParams(
            dimension_semantics=("parallel", "arbitrary"),
            vmem_limit_bytes=32 * 1024 * 1024,   # explicit budget; fits v7x's 64 MiB
        ),
    )(x3, wb, w1s, b1s, wfct, bfc3)
    return out.reshape(B, nc_pad)[:, :nc]


def reslt_reference(x_nchw, params):
    """Pure-JAX reference mirroring the PyTorch forward (eval mode)."""
    C = params["wb_oc"].shape[0]
    feats = jnp.einsum("bchw,oc->bohw", x_nchw, params["wb_oc"])
    feats = jnp.maximum(feats, 0.0)
    pooled = jnp.mean(feats, axis=(2, 3))                      # (B, C)
    y = pooled @ params["w1_oc"].T                             # (B, 3C)
    y = (y - params["running_mean"]) / jnp.sqrt(params["running_var"] + BN_EPS) \
        * params["gamma"] + params["beta"]
    y = jnp.maximum(y, 0.0)
    fc = lambda z: z @ params["wfc"].T + params["bfc"]
    return fc(y[:, :C]) + fc(y[:, C:2 * C]) + fc(y[:, 2 * C:])


if __name__ == "__main__":
    B, Cin, H, W = 2, 4, 16, 16
    feature_dim, num_classes = 32, 10

    key = jax.random.PRNGKey(0)
    ks = jax.random.split(key, 9)

    params = {
        # backbone stand-in: 1x1 conv (Cin -> feature_dim), torch layout (out, in)
        "wb_oc": 0.2 * jax.random.normal(ks[0], (feature_dim, Cin), jnp.float32),
        # finalBlock conv: (3C, C)
        "w1_oc": 0.1 * jax.random.normal(ks[1], (3 * feature_dim, feature_dim), jnp.float32),
        # BatchNorm2d(3C) params / running stats
        "gamma": 1.0 + 0.1 * jax.random.normal(ks[2], (3 * feature_dim,), jnp.float32),
        "beta": 0.05 * jax.random.normal(ks[3], (3 * feature_dim,), jnp.float32),
        "running_mean": 0.05 * jax.random.normal(ks[4], (3 * feature_dim,), jnp.float32),
        "running_var": 1.0 + 0.1 * jax.random.uniform(ks[5], (3 * feature_dim,), jnp.float32),
        # fc: (num_classes, feature_dim) + bias
        "wfc": 0.1 * jax.random.normal(ks[6], (num_classes, feature_dim), jnp.float32),
        "bfc": 0.05 * jax.random.normal(ks[7], (num_classes,), jnp.float32),
    }

    x = jax.random.normal(ks[8], (B, Cin, H, W), jnp.float32)

    ref = jax.block_until_ready(reslt_reference(x, params))

    # Default tiling (single spatial step, f32 parity with PyTorch) ...
    out_full = jax.block_until_ready(reslt_forward(x, params))
    # ... an explicit 2-step spatial grid to exercise the pl.when accumulator path ...
    out_tiled = jax.block_until_ready(reslt_forward(x, params, spatial_tile=128))
    # ... and the bf16 deployment path (backbone matmul in bf16, f32 accumulation).
    out_bf16 = jax.block_until_ready(
        reslt_forward(x, params, compute_dtype=jnp.bfloat16))

    assert out_full.shape == (B, num_classes), out_full.shape
    assert jnp.allclose(out_full, ref, rtol=1e-4, atol=1e-4), (out_full, ref)
    assert jnp.allclose(out_tiled, ref, rtol=1e-4, atol=1e-4), (out_tiled, ref)
    assert jnp.allclose(out_bf16, ref, rtol=5e-2, atol=5e-2), (out_bf16, ref)
    print("KERNEL_OK")
</pallas_src>

<mosaic_0001>
module attributes {stable_mosaic.version = 11 : i64} {
  func.func @reslt_kernel(%arg0: i32, %arg1: i32, %arg2: memref<1x4x256xf32, #tpu.memory_space<vmem>>, %arg3: memref<32x4xf32, #tpu.memory_space<vmem>>, %arg4: memref<3x32x32xf32, #tpu.memory_space<vmem>>, %arg5: memref<3x1x32xf32, #tpu.memory_space<vmem>>, %arg6: memref<32x128xf32, #tpu.memory_space<vmem>>, %arg7: memref<1x128xf32, #tpu.memory_space<vmem>>, %arg8: memref<1x1x128xf32, #tpu.memory_space<vmem>>, %arg9: memref<1x32xf32, #tpu.memory_space<vmem>>) attributes {dimension_semantics = [#tpu.dimension_semantics<parallel>, #tpu.dimension_semantics<arbitrary>], iteration_bounds = array<i64: 2, 1>, scalar_prefetch = 0 : i64, scratch_operands = 1 : i64, tpu.core_type = #tpu.core_type<tc>, window_params = [{transform_indices = @transform_0, window_bounds = array<i64: 1, 4, 256>}, {pipeline_mode = #tpu.pipeline_mode<synchronous>, transform_indices = @transform_1, window_bounds = array<i64: 32, 4>}, {pipeline_mode = #tpu.pipeline_mode<synchronous>, transform_indices = @transform_2, window_bounds = array<i64: 3, 32, 32>}, {pipeline_mode = #tpu.pipeline_mode<synchronous>, transform_indices = @transform_3, window_bounds = array<i64: 3, 1, 32>}, {pipeline_mode = #tpu.pipeline_mode<synchronous>, transform_indices = @transform_4, window_bounds = array<i64: 32, 128>}, {pipeline_mode = #tpu.pipeline_mode<synchronous>, transform_indices = @transform_5, window_bounds = array<i64: 1, 128>}, {transform_indices = @transform_6, window_bounds = array<i64: 1, 1, 128>}]} {
    %c0_i32 = arith.constant 0 : i32
    %0 = arith.cmpi eq, %arg1, %c0_i32 : i32
    %1 = arith.extui %0 : i1 to i32
    %c0_i32_0 = arith.constant 0 : i32
    %2 = arith.cmpi ne, %1, %c0_i32_0 : i32
    scf.if %2 {
      %cst_14 = arith.constant 0.000000e+00 : f32
      %17 = vector.broadcast %cst_14 : f32 to vector<1x32xf32>
      %c0_15 = arith.constant 0 : index
      %c0_16 = arith.constant 0 : index
      %18 = vector.load %arg9[%c0_15, %c0_16] : memref<1x32xf32, #tpu.memory_space<vmem>>, vector<1x32xf32>
      tpu.vector_store %arg9[%c0_15, %c0_16], %17 {strides = array<i32>} : memref<1x32xf32, #tpu.memory_space<vmem>>, vector<1x32xf32>,
    } else {
    }
    %c0 = arith.constant 0 : index
    %c0_1 = arith.constant 0 : index
    %3 = vector.load %arg3[%c0, %c0_1] : memref<32x4xf32, #tpu.memory_space<vmem>>, vector<32x4xf32>
    %c0_2 = arith.constant 0 : index
    %c0_3 = arith.constant 0 : index
    %c0_4 = arith.constant 0 : index
    %4 = vector.load %arg2[%c0_2, %c0_3, %c0_4] : memref<1x4x256xf32, #tpu.memory_space<vmem>>, vector<1x4x256xf32>
    %5 = vector.shape_cast %4 : vector<1x4x256xf32> to vector<4x256xf32>
    %cst = arith.constant dense<0.000000e+00> : vector<32x256xf32>
    %6 = tpu.matmul %3, %5, %cst {dimension_numbers = #tpu.dot_dimension_numbers<[1], [0], [0], [1], [0, 0, 1, 1], [], []>} : vector<32x4xf32>, vector<4x256xf32>, vector<32x256xf32> -> vector<32x256xf32>
    %cst_5 = arith.constant 0.000000e+00 : f32
    %7 = vector.broadcast %cst_5 : f32 to vector<32x256xf32>
    %8 = arith.maximumf %6, %7 : vector<32x256xf32>
    %cst_6 = arith.constant 1.000000e+00 : f32
    %9 = vector.broadcast %cst_6 : f32 to vector<1x256xf32>
    %c0_7 = arith.constant 0 : index
    %c0_8 = arith.constant 0 : index
    %10 = vector.load %arg9[%c0_7, %c0_8] : memref<1x32xf32, #tpu.memory_space<vmem>>, vector<1x32xf32>
    %cst_9 = arith.constant dense<0.000000e+00> : vector<1x32xf32>
    %11 = tpu.matmul %9, %8, %cst_9 {dimension_numbers = #tpu.dot_dimension_numbers<[1], [1], [0], [0], [0, 0, 1, 0], [], []>} : vector<1x256xf32>, vector<32x256xf32>, vector<1x32xf32> -> vector<1x32xf32>
    %12 = arith.addf %10, %11 : vector<1x32xf32>
    %c0_10 = arith.constant 0 : index
    %c0_11 = arith.constant 0 : index
    %13 = vector.load %arg9[%c0_10, %c0_11] : memref<1x32xf32, #tpu.memory_space<vmem>>, vector<1x32xf32>
    tpu.vector_store %arg9[%c0_10, %c0_11], %12 {strides = array<i32>} : memref<1x32xf32, #tpu.memory_space<vmem>>, vector<1x32xf32>,
    %c0_i32_12 = arith.constant 0 : i32
    %14 = arith.cmpi eq, %arg1, %c0_i32_12 : i32
    %15 = arith.extui %14 : i1 to i32
    %c0_i32_13 = arith.constant 0 : i32
    %16 = arith.cmpi ne, %15, %c0_i32_13 : i32
    scf.if %16 {
      %c0_14 = arith.constant 0 : index
      %c0_15 = arith.constant 0 : index
      %17 = vector.load %arg9[%c0_14, %c0_15] : memref<1x32xf32, #tpu.memory_space<vmem>>, vector<1x32xf32>
      %c0_16 = arith.constant 0 : index
      %c0_17 = arith.constant 0 : index
      %c0_18 = arith.constant 0 : index
      %18 = vector.load %arg4[%c0_16, %c0_17, %c0_18] : memref<3x32x32xf32, #tpu.memory_space<vmem>>, vector<1x32x32xf32>
      %19 = vector.shape_cast %18 : vector<1x32x32xf32> to vector<32x32xf32>
      %cst_19 = arith.constant dense<0.000000e+00> : vector<1x32xf32>
      %20 = tpu.matmul %17, %19, %cst_19 {dimension_numbers = #tpu.dot_dimension_numbers<[1], [0], [0], [1], [0, 0, 1, 1], [], []>} : vector<1x32xf32>, vector<32x32xf32>, vector<1x32xf32> -> vector<1x32xf32>
      %c0_20 = arith.constant 0 : index
      %c0_21 = arith.constant 0 : index
      %c0_22 = arith.constant 0 : index
      %21 = vector.load %arg5[%c0_20, %c0_21, %c0_22] : memref<3x1x32xf32, #tpu.memory_space<vmem>>, vector<1x1x32xf32>
      %22 = vector.shape_cast %21 : vector<1x1x32xf32> to vector<1x32xf32>
      %23 = arith.addf %20, %22 : vector<1x32xf32>
      %cst_23 = arith.constant 0.000000e+00 : f32
      %24 = vector.broadcast %cst_23 : f32 to vector<1x32xf32>
      %25 = arith.maximumf %23, %24 : vector<1x32xf32>
      %c1 = arith.constant 1 : index
      %c0_24 = arith.constant 0 : index
      %c0_25 = arith.constant 0 : index
      %26 = vector.load %arg4[%c1, %c0_24, %c0_25] : memref<3x32x32xf32, #tpu.memory_space<vmem>>, vector<1x32x32xf32>
      %27 = vector.shape_cast %26 : vector<1x32x32xf32> to vector<32x32xf32>
      %cst_26 = arith.constant dense<0.000000e+00> : vector<1x32xf32>
      %28 = tpu.matmul %17, %27, %cst_26 {dimension_numbers = #tpu.dot_dimension_numbers<[1], [0], [0], [1], [0, 0, 1, 1], [], []>} : vector<1x32xf32>, vector<32x32xf32>, vector<1x32xf32> -> vector<1x32xf32>
      %c1_27 = arith.constant 1 : index
      %c0_28 = arith.constant 0 : index
      %c0_29 = arith.constant 0 : index
      %29 = vector.load %arg5[%c1_27, %c0_28, %c0_29] : memref<3x1x32xf32, #tpu.memory_space<vmem>>, vector<1x1x32xf32>
      %30 = vector.shape_cast %29 : vector<1x1x32xf32> to vector<1x32xf32>
      %31 = arith.addf %28, %30 : vector<1x32xf32>
      %cst_30 = arith.constant 0.000000e+00 : f32
      %32 = vector.broadcast %cst_30 : f32 to vector<1x32xf32>
      %33 = arith.maximumf %31, %32 : vector<1x32xf32>
      %c2 = arith.constant 2 : index
      %c0_31 = arith.constant 0 : index
      %c0_32 = arith.constant 0 : index
      %34 = vector.load %arg4[%c2, %c0_31, %c0_32] : memref<3x32x32xf32, #tpu.memory_space<vmem>>, vector<1x32x32xf32>
      %35 = vector.shape_cast %34 : vector<1x32x32xf32> to vector<32x32xf32>
      %cst_33 = arith.constant dense<0.000000e+00> : vector<1x32xf32>
      %36 = tpu.matmul %17, %35, %cst_33 {dimension_numbers = #tpu.dot_dimension_numbers<[1], [0], [0], [1], [0, 0, 1, 1], [], []>} : vector<1x32xf32>, vector<32x32xf32>, vector<1x32xf32> -> vector<1x32xf32>
      %c2_34 = arith.constant 2 : index
      %c0_35 = arith.constant 0 : index
      %c0_36 = arith.constant 0 : index
      %37 = vector.load %arg5[%c2_34, %c0_35, %c0_36] : memref<3x1x32xf32, #tpu.memory_space<vmem>>, vector<1x1x32xf32>
      %38 = vector.shape_cast %37 : vector<1x1x32xf32> to vector<1x32xf32>
      %39 = arith.addf %36, %38 : vector<1x32xf32>
      %cst_37 = arith.constant 0.000000e+00 : f32
      %40 = vector.broadcast %cst_37 : f32 to vector<1x32xf32>
      %41 = arith.maximumf %39, %40 : vector<1x32xf32>
      %42 = arith.addf %25, %33 : vector<1x32xf32>
      %43 = arith.addf %42, %41 : vector<1x32xf32>
      %c0_38 = arith.constant 0 : index
      %c0_39 = arith.constant 0 : index
      %44 = vector.load %arg6[%c0_38, %c0_39] : memref<32x128xf32, #tpu.memory_space<vmem>>, vector<32x128xf32>
      %cst_40 = arith.constant dense<0.000000e+00> : vector<1x128xf32>
      %45 = tpu.matmul %43, %44, %cst_40 {dimension_numbers = #tpu.dot_dimension_numbers<[1], [0], [0], [1], [0, 0, 1, 1], [], []>} : vector<1x32xf32>, vector<32x128xf32>, vector<1x128xf32> -> vector<1x128xf32>
      %c0_41 = arith.constant 0 : index
      %c0_42 = arith.constant 0 : index
      %46 = vector.load %arg7[%c0_41, %c0_42] : memref<1x128xf32, #tpu.memory_space<vmem>>, vector<1x128xf32>
      %47 = arith.addf %45, %46 : vector<1x128xf32>
      %c0_43 = arith.constant 0 : index
      %c0_44 = arith.constant 0 : index
      %c0_45 = arith.constant 0 : index
      %48 = vector.load %arg8[%c0_43, %c0_44, %c0_45] : memref<1x1x128xf32, #tpu.memory_space<vmem>>, vector<1x1x128xf32>
      %49 = vector.shape_cast %48 : vector<1x1x128xf32> to vector<1x128xf32>
      %50 = vector.shape_cast %47 : vector<1x128xf32> to vector<1x1x128xf32>
      tpu.vector_store %arg8[%c0_43, %c0_44, %c0_45], %50 {strides = array<i32>} : memref<1x1x128xf32, #tpu.memory_space<vmem>>, vector<1x1x128xf32>,
    } else {
    }
    return
  }
  func.func @transform_0(%arg0: i32, %arg1: i32) -> (i32, i32, i32) {
    %c0_i32 = arith.constant 0 : i32
    %c0_i32_0 = arith.constant 0 : i32
    return %arg0, %c0_i32, %arg1 : i32, i32, i32
  }
  func.func @transform_1(%arg0: i32, %arg1: i32) -> (i32, i32) {
    %c0_i32 = arith.constant 0 : i32
    %c0_i32_0 = arith.constant 0 : i32
    %c0_i32_1 = arith.constant 0 : i32
    return %c0_i32, %c0_i32_0 : i32, i32
  }
  func.func @transform_2(%arg0: i32, %arg1: i32) -> (i32, i32, i32) {
    %c0_i32 = arith.constant 0 : i32
    %c0_i32_0 = arith.constant 0 : i32
    %c0_i32_1 = arith.constant 0 : i32
    %c0_i32_2 = arith.constant 0 : i32
    return %c0_i32, %c0_i32_0, %c0_i32_1 : i32, i32, i32
  }
  func.func @transform_3(%arg0: i32, %arg1: i32) -> (i32, i32, i32) {
    %c0_i32 = arith.constant 0 : i32
    %c0_i32_0 = arith.constant 0 : i32
    %c0_i32_1 = arith.constant 0 : i32
    %c0_i32_2 = arith.constant 0 : i32
    return %c0_i32, %c0_i32_0, %c0_i32_1 : i32, i32, i32
  }
  func.func @transform_4(%arg0: i32, %arg1: i32) -> (i32, i32) {
    %c0_i32 = arith.constant 0 : i32
    %c0_i32_0 = arith.constant 0 : i32
    %c0_i32_1 = arith.constant 0 : i32
    return %c0_i32, %c0_i32_0 : i32, i32
  }
  func.func @transform_5(%arg0: i32, %arg1: i32) -> (i32, i32) {
    %c0_i32 = arith.constant 0 : i32
    %c0_i32_0 = arith.constant 0 : i32
    %c0_i32_1 = arith.constant 0 : i32
    return %c0_i32, %c0_i32_0 : i32, i32
  }
  func.func @transform_6(%arg0: i32, %arg1: i32) -> (i32, i32, i32) {
    %c0_i32 = arith.constant 0 : i32
    %c0_i32_0 = arith.constant 0 : i32
    %c0_i32_1 = arith.constant 0 : i32
    return %arg0, %c0_i32, %c0_i32_0 : i32, i32, i32
  }
}

</mosaic_0001>

<llo_original>
// kernel: tpu_custom_call.1
$region0: #{tpu_custom_call.1}
  #allocation0 [shape = 'u32[]', space=smem, size = 0x4, offset = 0x4, fixed_abs, tag = 'smem constant byte address 0x4 - core index']
  #allocation1 [shape = 'u32[144,128]{1,0:T(1,128)}', space=vmem, size = 0x12000, scoped, tag = 'internal scratch']
  #allocation2 [shape = 'f32[1,32]{1,0:T(1,128)}', space=vmem, size = 0x200, scoped, tag = 'scratch operand']
  %s0 = inlined_call_operand.hbm [shape: f32[2,4,256], index: 0, kind: input, shape index: {}]
  %s1 = inlined_call_operand.vmem [shape: f32[32,4], index: 1, kind: input, shape index: {}]
  %s2 = inlined_call_operand.hbm [shape: f32[3,32,32], index: 2, kind: input, shape index: {}]
  %s3 = inlined_call_operand.vmem [shape: f32[3,1,32], index: 3, kind: input, shape index: {}]
  %s4 = inlined_call_operand.vmem [shape: f32[32,128], index: 4, kind: input, shape index: {}]
  %s5 = inlined_call_operand.vmem [shape: f32[1,128], index: 5, kind: input, shape index: {}]
  %s6 = inlined_call_operand.hbm [shape: f32[2,1,128], index: 6, kind: output, shape index: {}]
  %s7 = sld [smem:[#allocation0]]
  $region73: #{tpu_custom_call.1} parent=0
    _
  %s9 = ssub.s32 1, %s7
  %s10 = scalar_select 0, %s9, %s7
  $region1: #{tpu_custom_call.1} parent=0
    #allocation3 [shape = 'u8[8192]{0}', space=vmem, size = 0x2000, scoped, tag = 'input window, operand 0']
    #allocation4 [shape = 's32[2]{0}', space=sflag, size = 0x8, scoped, tag = 'scoped memory for tpu_custom_call.1']
    #allocation5 [shape = 's32[2]{0}', space=sflag, size = 0x8, scoped, tag = 'scoped memory for tpu_custom_call.1']
    #allocation6 [shape = 'u8[49152]{0}', space=vmem, size = 0xc000, scoped, tag = 'input window, operand 2, single buffered']
    #allocation7 [shape = 's32[1]{0}', space=sflag, size = 0x4, scoped, tag = 'scoped memory for tpu_custom_call.1']
    #allocation8 [shape = 'u8[1024]{0}', space=vmem, size = 0x400, scoped, tag = 'output window, operand 0']
    %11 = vsyncpa [#allocation4], 0
    %s12 = scalar_lea.sflag [#allocation4], 1
    %13 = vsyncpa %s12, 0
    %14 = vsyncpa [#allocation7], 0
    %15 = vsyncpa [#allocation5], 0
    %s16 = scalar_lea.sflag [#allocation5], 1
    %17 = vsyncpa %s16, 0
    loop: start=0, step=1, limit=4
    $region2: #{tpu_custom_call.1} parent=1 // loop_pre_header
      _
    $region3: #{tpu_custom_call.1} parent=1 // loop_header
      %s19 = sphi 0, %s23
      %p20 = scmp.ge.s32.totalorder %s19, 4
      %s26 = sphi 0, %s38
      %s27 = sphi 0, %s34
      %s28 = sphi 0, %s26
      %s29 = sphi 0, %s27
      %s30 = sphi 0, %s28
      %s31 = sphi 0, %s29
      %s43 = sphi 0, %s45
      %s46 = sphi 0, %s43
      %s47 = sphi 0, %s46
      %s63 = sphi 0, %s47
      %s67 = sphi 0, %s67
      %s69 = sphi 0, %s67
      %s70 = sphi 0, %s69
      %s84 = sphi 0, %s70
      %s88 = sphi 0, %s88
      %s90 = sphi 0, %s88
      %s91 = sphi 0, %s90
      %s105 = sphi 0, %s91
      %s109 = sphi 0, %s109
      %s111 = sphi 0, %s109
      %s112 = sphi 0, %s111
      %s126 = sphi 0, %s112
      %s130 = sphi 0, %s130
      %s132 = sphi 0, %s130
      %s133 = sphi 0, %s132
      %s147 = sphi 0, %s133
      %s151 = sphi 0, %s151
      %s153 = sphi 0, %s151
      %s154 = sphi 0, %s153
      %s168 = sphi 0, %s154
      %s174 = sphi 0, %s176
      %s177 = sphi 0, %s174
      %s178 = sphi 0, %s177
      %s194 = sphi 0, %s178
    $region4: #{tpu_custom_call.1} parent=1 // loop_header_branch
      %22 = sbr.rel (%p20) target = $region8
    $region5: #{tpu_custom_call.1} parent=1 // loop_body
      %s24 = ssub.s32 %s19, 1
      %s25 = ssub.s32 %s19, 2
      %s32 = sadd.s32 1, %s27
      %p33 = scmp.ge.s32.totalorder %s32, 1
      %s34 = scalar_select %p33, 0, %s32
      %s35 = sadd.s32 1, %s26
      %s36 = scalar_select %p33, %s35, %s26
      %p37 = scmp.ge.s32.totalorder %s36, 2
      %s38 = scalar_select %p37, 0, %s36
      %s39 = ssub.s32 %s26, %s38
      %s40 = ssub.s32 %s27, %s34
      %s41 = sor.u32 %s39, %s40
      %p42 = scmp.eq.s32.totalorder %s41, 0
      %s44 = sadd.s32 %s43, 1
      %s45 = scalar_select %p42, %s43, %s44
      %p48 = pneg %p42
      %p49 = scmp.eq.s32.totalorder %s19, 1
      %p50 = por %p48, %p49
      %p51 = scmp.ne.s32.totalorder %s43, %s46
      %p52 = scmp.eq.s32.totalorder %s19, 0
      %p53 = por %p51, %p52
      %p54 = scmp.ne.s32.totalorder %s43, %s46
      %p55 = scmp.eq.s32.totalorder %s24, 1
      %p56 = por %p54, %p55
      %p57 = scmp.ne.s32.totalorder %s46, %s47
      %p58 = scmp.eq.s32.totalorder %s24, 0
      %p59 = por %p57, %p58
      %p60 = scmp.ne.s32.totalorder %s46, %s47
      %p61 = scmp.eq.s32.totalorder %s25, 1
      %p62 = por %p60, %p61
      %p64 = scmp.ne.s32.totalorder %s47, %s63
      %p65 = scmp.eq.s32.totalorder %s25, 0
      %p66 = por %p64, %p65
      %s68 = sadd.s32 %s67, 1
      %p71 = scmp.eq.s32.totalorder %s19, 1
      %p72 = scmp.ne.s32.totalorder %s67, %s69
      %p73 = scmp.eq.s32.totalorder %s19, 0
      %p74 = por %p72, %p73
      %p75 = scmp.ne.s32.totalorder %s67, %s69
      %p76 = scmp.eq.s32.totalorder %s24, 1
      %p77 = por %p75, %p76
      %p78 = scmp.ne.s32.totalorder %s69, %s70
      %p79 = scmp.eq.s32.totalorder %s24, 0
      %p80 = por %p78, %p79
      %p81 = scmp.ne.s32.totalorder %s69, %s70
      %p82 = scmp.eq.s32.totalorder %s25, 1
      %p83 = por %p81, %p82
      %p85 = scmp.ne.s32.totalorder %s70, %s84
      %p86 = scmp.eq.s32.totalorder %s25, 0
      %p87 = por %p85, %p86
      %s89 = sadd.s32 %s88, 1
      %p92 = scmp.eq.s32.totalorder %s19, 1
      %p93 = scmp.ne.s32.totalorder %s88, %s90
      %p94 = scmp.eq.s32.totalorder %s19, 0
      %p95 = por %p93, %p94
      %p96 = scmp.ne.s32.totalorder %s88, %s90
      %p97 = scmp.eq.s32.totalorder %s24, 1
      %p98 = por %p96, %p97
      %p99 = scmp.ne.s32.totalorder %s90, %s91
      %p100 = scmp.eq.s32.totalorder %s24, 0
      %p101 = por %p99, %p100
      %p102 = scmp.ne.s32.totalorder %s90, %s91
      %p103 = scmp.eq.s32.totalorder %s25, 1
      %p104 = por %p102, %p103
      %p106 = scmp.ne.s32.totalorder %s91, %s105
      %p107 = scmp.eq.s32.totalorder %s25, 0
      %p108 = por %p106, %p107
      %s110 = sadd.s32 %s109, 1
      %p113 = scmp.eq.s32.totalorder %s19, 1
      %p114 = scmp.ne.s32.totalorder %s109, %s111
      %p115 = scmp.eq.s32.totalorder %s19, 0
      %p116 = por %p114, %p115
      %p117 = scmp.ne.s32.totalorder %s109, %s111
      %p118 = scmp.eq.s32.totalorder %s24, 1
      %p119 = por %p117, %p118
      %p120 = scmp.ne.s32.totalorder %s111, %s112
      %p121 = scmp.eq.s32.totalorder %s24, 0
      %p122 = por %p120, %p121
      %p123 = scmp.ne.s32.totalorder %s111, %s112
      %p124 = scmp.eq.s32.totalorder %s25, 1
      %p125 = por %p123, %p124
      %p127 = scmp.ne.s32.totalorder %s112, %s126
      %p128 = scmp.eq.s32.totalorder %s25, 0
      %p129 = por %p127, %p128
      %s131 = sadd.s32 %s130, 1
      %p134 = scmp.eq.s32.totalorder %s19, 1
      %p135 = scmp.ne.s32.totalorder %s130, %s132
      %p136 = scmp.eq.s32.totalorder %s19, 0
      %p137 = por %p135, %p136
      %p138 = scmp.ne.s32.totalorder %s130, %s132
      %p139 = scmp.eq.s32.totalorder %s24, 1
      %p140 = por %p138, %p139
      %p141 = scmp.ne.s32.totalorder %s132, %s133
      %p142 = scmp.eq.s32.totalorder %s24, 0
      %p143 = por %p141, %p142
      %p144 = scmp.ne.s32.totalorder %s132, %s133
      %p145 = scmp.eq.s32.totalorder %s25, 1
      %p146 = por %p144, %p145
      %p148 = scmp.ne.s32.totalorder %s133, %s147
      %p149 = scmp.eq.s32.totalorder %s25, 0
      %p150 = por %p148, %p149
      %s152 = sadd.s32 %s151, 1
      %p155 = scmp.eq.s32.totalorder %s19, 1
      %p156 = scmp.ne.s32.totalorder %s151, %s153
      %p157 = scmp.eq.s32.totalorder %s19, 0
      %p158 = por %p156, %p157
      %p159 = scmp.ne.s32.totalorder %s151, %s153
      %p160 = scmp.eq.s32.totalorder %s24, 1
      %p161 = por %p159, %p160
      %p162 = scmp.ne.s32.totalorder %s153, %s154
      %p163 = scmp.eq.s32.totalorder %s24, 0
      %p164 = por %p162, %p163
      %p165 = scmp.ne.s32.totalorder %s153, %s154
      %p166 = scmp.eq.s32.totalorder %s25, 1
      %p167 = por %p165, %p166
      %p169 = scmp.ne.s32.totalorder %s154, %s168
      %p170 = scmp.eq.s32.totalorder %s25, 0
      %p171 = por %p169, %p170
      %s172 = ssub.s32 %s26, %s38
      %p173 = scmp.eq.s32.totalorder %s172, 0
      %s175 = sadd.s32 %s174, 1
      %s176 = scalar_select %p173, %s174, %s175
      %p179 = pneg %p173
      %p180 = scmp.eq.s32.totalorder %s19, 1
      %p181 = por %p179, %p180
      %p182 = scmp.ne.s32.totalorder %s174, %s177
      %p183 = scmp.eq.s32.totalorder %s19, 0
      %p184 = por %p182, %p183
      %p185 = scmp.ne.s32.totalorder %s174, %s177
      %p186 = scmp.eq.s32.totalorder %s24, 1
      %p187 = por %p185, %p186
      %p188 = scmp.ne.s32.totalorder %s177, %s178
      %p189 = scmp.eq.s32.totalorder %s24, 0
      %p190 = por %p188, %p189
      %p191 = scmp.ne.s32.totalorder %s177, %s178
      %p192 = scmp.eq.s32.totalorder %s25, 1
      %p193 = por %p191, %p192
      %p195 = scmp.ne.s32.totalorder %s178, %s194
      %p196 = scmp.eq.s32.totalorder %s25, 0
      %p197 = por %p195, %p196
      %p198 = scmp.le.s32.totalorder 1, %s19
      %p199 = scmp.lt.s32.totalorder %s19, 3
      %p200 = pnand %p198, %p199
      %p201 = pneg %p200
      // Predicated region
      $region9: #{tpu_custom_call.1} parent=5 // pred_check
        _
      $region10: #{tpu_custom_call.1} parent=5 // pred_check_branch
        %203 = sbr.rel (%p200) target = $region12
      $region11: #{tpu_custom_call.1} parent=5 // pred_region
        %s204 = ssub.s32 %s19, 1
        // Predicated region
        $region13: #{tpu_custom_call.1} parent=11 // pred_check
          %p205 = pneg %p80
        $region14: #{tpu_custom_call.1} parent=11 // pred_check_branch
          %207 = sbr.rel (%p205) target = $region16
        $region15: #{tpu_custom_call.1} parent=11 // pred_region
          _
        $region16: #{tpu_custom_call.1} parent=11 // pred_fallthru
          _
        // Predicated region
        $region17: #{tpu_custom_call.1} parent=11 // pred_check
          %p208 = pneg %p101
        $region18: #{tpu_custom_call.1} parent=11 // pred_check_branch
          %210 = sbr.rel (%p208) target = $region20
        $region19: #{tpu_custom_call.1} parent=11 // pred_region
          %s212 = ssub.s32 1536, 1536
          %213 = vsyncadd [#allocation7], %s212
          %s214 = sshll.u32 [#allocation6], 4
          %s215 = int_to_ptr.vmem [resolvable:$true] %s214
          %220 = dma.hbm_to_vmem [thread:$0]  %s2, 1536, %s215, [#allocation7], 128, 128, 8
        $region20: #{tpu_custom_call.1} parent=11 // pred_fallthru
          _
        // Predicated region
        $region21: #{tpu_custom_call.1} parent=11 // pred_check
          %p221 = pneg %p122
        $region22: #{tpu_custom_call.1} parent=11 // pred_check_branch
          %223 = sbr.rel (%p221) target = $region24
        $region23: #{tpu_custom_call.1} parent=11 // pred_region
          _
        $region24: #{tpu_custom_call.1} parent=11 // pred_fallthru
          _
        // Predicated region
        $region25: #{tpu_custom_call.1} parent=11 // pred_check
          %p224 = pneg %p143
        $region26: #{tpu_custom_call.1} parent=11 // pred_check_branch
          %226 = sbr.rel (%p224) target = $region28
        $region27: #{tpu_custom_call.1} parent=11 // pred_region
          _
        $region28: #{tpu_custom_call.1} parent=11 // pred_fallthru
          _
        // Predicated region
        $region29: #{tpu_custom_call.1} parent=11 // pred_check
          %p227 = pneg %p164
        $region30: #{tpu_custom_call.1} parent=11 // pred_check_branch
          %229 = sbr.rel (%p227) target = $region32
        $region31: #{tpu_custom_call.1} parent=11 // pred_region
          _
        $region32: #{tpu_custom_call.1} parent=11 // pred_fallthru
          _
      $region12: #{tpu_custom_call.1} parent=5 // pred_fallthru
        _
      %p230 = scmp.lt.s32.totalorder %s19, 2
      // Predicated region
      $region33: #{tpu_custom_call.1} parent=5 // pred_check
        %p231 = pneg %p230
      $region34: #{tpu_custom_call.1} parent=5 // pred_check_branch
        %233 = sbr.rel (%p231) target = $region36
      $region35: #{tpu_custom_call.1} parent=5 // pred_region
        // Predicated region
        $region37: #{tpu_custom_call.1} parent=35 // pred_check
          %p234 = pneg %p53
        $region38: #{tpu_custom_call.1} parent=35 // pred_check_branch
          %236 = sbr.rel (%p234) target = $region40
        $region39: #{tpu_custom_call.1} parent=35 // pred_region
          %s237 = sand.u32 %s43, 1
          %s238 = scalar_lea.sflag [#allocation4], %s237
          %s239 = sand.u32 %s43, 1
          %s240 = smul.addr %s239, 8
          %s241 = scalar_lea.vmem [#allocation3], %s240
          %s242 = smul.u32 2, %s27
          %s244 = ssub.s32 128, 128
          %245 = vsyncadd %s238, %s244
          %s246 = smul.addr %s26, 2
          %s247 = sadd.s32 %s242, %s246
          %s248 = smul.addr %s247, 64
          %s249 = scalar_lea.hbm %s0, %s248
          %s251 = sshll.u32 %s241, 4
          %s252 = int_to_ptr.vmem [resolvable:$true] %s251
          %254 = dma.hbm_to_vmem [thread:$0]  %s249, 128, %s252, %s238
        $region40: #{tpu_custom_call.1} parent=35 // pred_fallthru
          _
      $region36: #{tpu_custom_call.1} parent=5 // pred_fallthru
        _
      %p255 = scmp.le.s32.totalorder 1, %s19
      %p256 = scmp.lt.s32.totalorder %s19, 3
      %p257 = pnand %p255, %p256
      %p258 = pneg %p257
      // Predicated region
      $region41: #{tpu_custom_call.1} parent=5 // pred_check
        _
      $region42: #{tpu_custom_call.1} parent=5 // pred_check_branch
        %260 = sbr.rel (%p257) target = $region44
      $region43: #{tpu_custom_call.1} parent=5 // pred_region
        %s261 = ssub.s32 %s19, 1
        %s262 = sand.u32 %s46, 1
        %s263 = scalar_lea.sflag [#allocation4], %s262
        %s264 = sand.u32 %s46, 1
        %s265 = smul.addr %s264, 8
        %s266 = scalar_lea.vmem [#allocation3], %s265
        // Predicated region
        $region45: #{tpu_custom_call.1} parent=43 // pred_check
          %p267 = pneg %p59
        $region46: #{tpu_custom_call.1} parent=43 // pred_check_branch
          %269 = sbr.rel (%p267) target = $region48
        $region47: #{tpu_custom_call.1} parent=43 // pred_region
          %270 = dma.done %s263, 128
        $region48: #{tpu_custom_call.1} parent=43 // pred_fallthru
          _
        // Predicated region
        $region49: #{tpu_custom_call.1} parent=43 // pred_check
          %p271 = pneg %p101
        $region50: #{tpu_custom_call.1} parent=43 // pred_check_branch
          %273 = sbr.rel (%p271) target = $region52
        $region51: #{tpu_custom_call.1} parent=43 // pred_region
          %274 = dma.done [#allocation7], 1536
        $region52: #{tpu_custom_call.1} parent=43 // pred_fallthru
          _
        %s275 = sand.u32 %s46, 1
        %s276 = scalar_lea.sflag [#allocation4], %s275
        %s277 = sand.u32 %s46, 1
        %s278 = smul.addr %s277, 8
        %s279 = scalar_lea.vmem [#allocation3], %s278
        %p280 = pneg %p59
        %p281 = pneg %p56
        %p282 = pneg %p80
        %p283 = pneg %p77
        %p284 = pneg %p101
        %p285 = pneg %p98
        %p286 = pneg %p122
        %p287 = pneg %p119
        %p288 = pneg %p143
        %p289 = pneg %p140
        %p290 = pneg %p164
        %p291 = pneg %p161
        %p292 = pneg %p190
        %p293 = pneg %p187
        %s294 = sand.u32 %s177, 1
        %s295 = scalar_lea.sflag [#allocation5], %s294
        %s296 = sand.u32 %s177, 1
        %s297 = scalar_lea.vmem [#allocation8], %s296
        %s298 = smul.u32 2, %s29
        %p299 = scmp.eq.s32.totalorder %s29, 0
        // Predicated region
        $region53: #{tpu_custom_call.1} parent=43 // pred_check
          %p300 = pneg %p299
        $region54: #{tpu_custom_call.1} parent=43 // pred_check_branch
          %302 = sbr.rel (%p300) target = $region56
        $region55: #{tpu_custom_call.1} parent=43 // pred_region
          %vm303 = vcmask 253952
          %304 = vst.msk [vmem:[#allocation2] sm:$0x1] %vm303, 0.0
        $region56: #{tpu_custom_call.1} parent=43 // pred_fallthru
          _
        %v305 = vld [vmem:[%s1] sm:$0xff]
        %v306 = vld [vmem:[%s1 + $0x8] sm:$0xff]
        %v307 = vld [vmem:[%s1 + $0x10] sm:$0xff]
        %v308 = vld [vmem:[%s1 + $0x18] sm:$0xff]
        %v309 = vld [vmem:[%s266] sm:$0xff]
        %v311 = vcombine.high %v309, %v309
        %vm312 = vcmask 31744
        %v314 = vsel %vm312, %v305, 0
        %v317 = vsel %vm312, %v306, 0
        %v320 = vsel %vm312, %v307, 0
        %v323 = vsel %vm312, %v308, 0
        %vm325 = vcmask 1043456
        %v326 = vsel %vm325, %v309, 0
        %v328 = vsel %vm325, %v311, 0
        %330 = vmatprep.subr.mxu0 0.0
        %331 = vmatpush1.msra.mxu0 0.0
        %332 = vmatprep.subr.mxu0 0.0
        %333 = vmatpush1.msra.mxu0 0.0
        %334 = vmatprep.subr.mxu0 0.0
        %335 = vmatpush1.msra.mxu0 0.0
        %336 = vmatprep.subr.mxu0 0.0
        %337 = vmatpush1.msra.mxu0 0.0
        %338 = vmatprep.subr.mxu0 0.0
        %339 = vmatpush1.msra.mxu0 0.0
        %340 = vmatprep.subr.mxu0 0.0
        %341 = vmatpush1.msra.mxu0 0.0
        %342 = vmatprep.subr.mxu0 0.0
        %343 = vmatpush1.msra.mxu0 0.0
        %344 = vmatprep.subr.mxu0 0.0
        %345 = vmatpush1.msra.mxu0 0.0
        %346 = vmatprep.subr.mxu0 0.0
        %347 = vmatpush1.msra.mxu0 0.0
        %348 = vmatprep.subr.mxu0 0.0
        %349 = vmatpush1.msra.mxu0 0.0
        %350 = vmatprep.subr.mxu0 0.0
        %351 = vmatpush1.msra.mxu0 0.0
        %352 = vmatprep.subr.mxu0 0.0
        %353 = vmatpush1.msra.mxu0 0.0
        %354 = vmatprep.subr.mxu0 0.0
        %355 = vmatpush1.msra.mxu0 0.0
        %356 = vmatprep.subr.mxu0 0.0
        %357 = vmatpush1.msra.mxu0 0.0
        %358 = vmatprep.subr.mxu0 0.0
        %359 = vmatpush1.msra.mxu0 0.0
        %360 = vmatprep.subr.mxu0 %v328
        %361 = vmatpush1.msra.mxu0 %v326
        %362 = vmatprep.subr.mxu0 0.0
        %363 = vmatpush2.msra.mxu0 0.0
        %364 = vmatprep.subr.mxu0 0.0
        %365 = vmatpush2.msra.mxu0 0.0
        %366 = vmatprep.subr.mxu0 0.0
        %367 = vmatpush2.msra.mxu0 0.0
        %368 = vmatprep.subr.mxu0 0.0
        %369 = vmatpush2.msra.mxu0 0.0
        %370 = vmatprep.subr.mxu0 0.0
        %371 = vmatpush2.msra.mxu0 0.0
        %372 = vmatprep.subr.mxu0 0.0
        %373 = vmatpush2.msra.mxu0 0.0
        %374 = vmatprep.subr.mxu0 0.0
        %375 = vmatpush2.msra.mxu0 0.0
        %376 = vmatprep.subr.mxu0 0.0
        %377 = vmatpush2.msra.mxu0 0.0
        %378 = vmatprep.subr.mxu0 0.0
        %379 = vmatpush2.msra.mxu0 0.0
        %380 = vmatprep.subr.mxu0 0.0
        %381 = vmatpush2.msra.mxu0 0.0
        %382 = vmatprep.subr.mxu0 0.0
        %383 = vmatpush2.msra.mxu0 0.0
        %384 = vmatprep.subr.mxu0 0.0
        %385 = vmatpush2.msra.mxu0 0.0
        %386 = vmatprep.subr.mxu0 0.0
        %387 = vmatpush2.msra.mxu0 0.0
        %388 = vmatprep.subr.mxu0 0.0
        %389 = vmatpush2.msra.mxu0 0.0
        %390 = vmatprep.subr.mxu0 0.0
        %391 = vmatpush2.msra.mxu0 0.0
        %392 = vmatprep.subr.mxu0 0.0
        %393 = vmatpush2.msra.mxu0 0.0
        %394 = vmatprep.mubr.f32.mxu0 0.0
        %395 = vmatmul.mubr.f32.gmra.mxu0 %v314
        %v396 = vpop.f32.mrf.mxu0
        %v397 = vadd.f32 0.0, %v396
        %v398 = vpop.f32.mrf.mxu0
        %v399 = vadd.f32 0.0, %v398
        %400 = vmatprep.mubr.f32.mxu0 0.0
        %401 = vmatmul.mubr.f32.gmra.mxu0 %v317
        %v402 = vpop.f32.mrf.mxu0
        %v403 = vadd.f32 0.0, %v402
        %v404 = vpop.f32.mrf.mxu0
        %v405 = vadd.f32 0.0, %v404
        %406 = vmatprep.mubr.f32.mxu0 0.0
        %407 = vmatmul.mubr.f32.gmra.mxu0 %v320
        %v408 = vpop.f32.mrf.mxu0
        %v409 = vadd.f32 0.0, %v408
        %v410 = vpop.f32.mrf.mxu0
        %v411 = vadd.f32 0.0, %v410
        %412 = vmatprep.mubr.f32.mxu0 0.0
        %413 = vmatmul.mubr.f32.gmra.mxu0 %v323
        %v414 = vpop.f32.mrf.mxu0
        %v415 = vadd.f32 0.0, %v414
        %v416 = vpop.f32.mrf.mxu0
        %v417 = vadd.f32 0.0, %v416
        %418 = vdwg.mxu0
        %v419 = vmax.f32 %v397, 0.0
        %v420 = vmax.f32 %v399, 0.0
        %v421 = vmax.f32 %v403, 0.0
        %v422 = vmax.f32 %v405, 0.0
        %v423 = vmax.f32 %v409, 0.0
        %v424 = vmax.f32 %v411, 0.0
        %v425 = vmax.f32 %v415, 0.0
        %v426 = vmax.f32 %v417, 0.0
        %v427 = vld [vmem:[#allocation2] sm:$0x1]
        %428 = vmatprep.subr.mxu0 0.0
        %429 = vmatpush1.xpose.msra.mxu0 0.0
        %430 = vmatprep.subr.mxu0 0.0
        %431 = vmatpush1.xpose.msra.mxu0 0.0
        %432 = vmatprep.subr.mxu0 0.0
        %433 = vmatpush1.xpose.msra.mxu0 0.0
        %434 = vmatprep.subr.mxu0 0.0
        %435 = vmatpush1.xpose.msra.mxu0 0.0
        %436 = vmatprep.subr.mxu0 0.0
        %437 = vmatpush1.xpose.msra.mxu0 0.0
        %438 = vmatprep.subr.mxu0 0.0
        %439 = vmatpush1.xpose.msra.mxu0 0.0
        %440 = vmatprep.subr.mxu0 0.0
        %441 = vmatpush1.xpose.msra.mxu0 0.0
        %442 = vmatprep.subr.mxu0 0.0
        %443 = vmatpush1.xpose.msra.mxu0 0.0
        %444 = vmatprep.subr.mxu0 0.0
        %445 = vmatpush1.xpose.msra.mxu0 0.0
        %446 = vmatprep.subr.mxu0 0.0
        %447 = vmatpush1.xpose.msra.mxu0 0.0
        %448 = vmatprep.subr.mxu0 0.0
        %449 = vmatpush1.xpose.msra.mxu0 0.0
        %450 = vmatprep.subr.mxu0 0.0
        %451 = vmatpush1.xpose.msra.mxu0 0.0
        %452 = vmatprep.subr.mxu0 %v426
        %453 = vmatpush1.xpose.msra.mxu0 %v425
        %454 = vmatprep.subr.mxu0 %v424
        %455 = vmatpush1.xpose.msra.mxu0 %v423
        %456 = vmatprep.subr.mxu0 %v422
        %457 = vmatpush1.xpose.msra.mxu0 %v421
        %458 = vmatprep.subr.mxu0 %v420
        %459 = vmatpush1.xpose.msra.mxu0 %v419
        %460 = vmatprep.subr.mxu0 0.0
        %461 = vmatpush2.xpose.msra.mxu0 0.0
        %462 = vmatprep.subr.mxu0 0.0
        %463 = vmatpush2.xpose.msra.mxu0 0.0
        %464 = vmatprep.subr.mxu0 0.0
        %465 = vmatpush2.xpose.msra.mxu0 0.0
        %466 = vmatprep.subr.mxu0 0.0
        %467 = vmatpush2.xpose.msra.mxu0 0.0
        %468 = vmatprep.subr.mxu0 0.0
        %469 = vmatpush2.xpose.msra.mxu0 0.0
        %470 = vmatprep.subr.mxu0 0.0
        %471 = vmatpush2.xpose.msra.mxu0 0.0
        %472 = vmatprep.subr.mxu0 0.0
        %473 = vmatpush2.xpose.msra.mxu0 0.0
        %474 = vmatprep.subr.mxu0 0.0
        %475 = vmatpush2.xpose.msra.mxu0 0.0
        %476 = vmatprep.subr.mxu0 0.0
        %477 = vmatpush2.xpose.msra.mxu0 0.0
        %478 = vmatprep.subr.mxu0 0.0
        %479 = vmatpush2.xpose.msra.mxu0 0.0
        %480 = vmatprep.subr.mxu0 0.0
        %481 = vmatpush2.xpose.msra.mxu0 0.0
        %482 = vmatprep.subr.mxu0 0.0
        %483 = vmatpush2.xpose.msra.mxu0 0.0
        %484 = vmatprep.subr.mxu0 0.0
        %485 = vmatpush2.xpose.msra.mxu0 0.0
        %486 = vmatprep.subr.mxu0 0.0
        %487 = vmatpush2.xpose.msra.mxu0 0.0
        %488 = vmatprep.subr.mxu0 0.0
        %489 = vmatpush2.xpose.msra.mxu0 0.0
        %490 = vmatprep.subr.mxu0 0.0
        %491 = vmatpush2.xpose.msra.mxu0 0.0
        %492 = vmatprep.mubr.f32.mxu0 1.0
        %493 = vmatmul.mubr.f32.gmra.mxu0 1.0
        %v494 = vpop.f32.mrf.mxu0
        %v495 = vadd.f32 0.0, %v494
        %v496 = vpop.f32.mrf.mxu0
        %497 = vdwg.mxu0
        %v498 = vadd.f32 %v427, %v495
        %vm499 = vcmask 253952
        %500 = vst.msk [vmem:[#allocation2] sm:$0x1] %vm499, %v498
        // Predicated region
        $region57: #{tpu_custom_call.1} parent=43 // pred_check
          %p501 = pneg %p299
        $region58: #{tpu_custom_call.1} parent=43 // pred_check_branch
          %503 = sbr.rel (%p501) target = $region60
        $region59: #{tpu_custom_call.1} parent=43 // pred_region
          %v504 = vld [vmem:[#allocation2] sm:$0x1]
          %v505 = vld [vmem:[#allocation6] sm:$0xff]
          %v506 = vld [vmem:[#allocation6 + $0x8] sm:$0xff]
          %v507 = vld [vmem:[#allocation6 + $0x10] sm:$0xff]
          %v508 = vld [vmem:[#allocation6 + $0x18] sm:$0xff]
          %v509 = vld [vmem:[%s3] sm:$0x1]
          %vm510 = vcmask 261120
          %v512 = vsel %vm510, %v504, 0
          %514 = vmatprep.subr.mxu0 0.0
          %515 = vmatpush1.msra.mxu0 0.0
          %516 = vmatprep.subr.mxu0 0.0
          %517 = vmatpush1.msra.mxu0 0.0
          %518 = vmatprep.subr.mxu0 0.0
          %519 = vmatpush1.msra.mxu0 0.0
          %520 = vmatprep.subr.mxu0 0.0
          %521 = vmatpush1.msra.mxu0 0.0
          %522 = vmatprep.subr.mxu0 0.0
          %523 = vmatpush1.msra.mxu0 0.0
          %524 = vmatprep.subr.mxu0 0.0
          %525 = vmatpush1.msra.mxu0 0.0
          %526 = vmatprep.subr.mxu0 0.0
          %527 = vmatpush1.msra.mxu0 0.0
          %528 = vmatprep.subr.mxu0 0.0
          %529 = vmatpush1.msra.mxu0 0.0
          %530 = vmatprep.subr.mxu0 0.0
          %531 = vmatpush1.msra.mxu0 0.0
          %532 = vmatprep.subr.mxu0 0.0
          %533 = vmatpush1.msra.mxu0 0.0
          %534 = vmatprep.subr.mxu0 0.0
          %535 = vmatpush1.msra.mxu0 0.0
          %536 = vmatprep.subr.mxu0 0.0
          %537 = vmatpush1.msra.mxu0 0.0
          %538 = vmatprep.subr.mxu0 0.0
          %539 = vmatpush1.msra.mxu0 %v508
          %540 = vmatprep.subr.mxu0 0.0
          %541 = vmatpush1.msra.mxu0 %v507
          %542 = vmatprep.subr.mxu0 0.0
          %543 = vmatpush1.msra.mxu0 %v506
          %544 = vmatprep.subr.mxu0 0.0
          %545 = vmatpush1.msra.mxu0 %v505
          %546 = vmatprep.subr.mxu0 0.0
          %547 = vmatpush2.msra.mxu0 0.0
          %548 = vmatprep.subr.mxu0 0.0
          %549 = vmatpush2.msra.mxu0 0.0
          %550 = vmatprep.subr.mxu0 0.0
          %551 = vmatpush2.msra.mxu0 0.0
          %552 = vmatprep.subr.mxu0 0.0
          %553 = vmatpush2.msra.mxu0 0.0
          %554 = vmatprep.subr.mxu0 0.0
          %555 = vmatpush2.msra.mxu0 0.0
          %556 = vmatprep.subr.mxu0 0.0
          %557 = vmatpush2.msra.mxu0 0.0
          %558 = vmatprep.subr.mxu0 0.0
          %559 = vmatpush2.msra.mxu0 0.0
          %560 = vmatprep.subr.mxu0 0.0
          %561 = vmatpush2.msra.mxu0 0.0
          %562 = vmatprep.subr.mxu0 0.0
          %563 = vmatpush2.msra.mxu0 0.0
          %564 = vmatprep.subr.mxu0 0.0
          %565 = vmatpush2.msra.mxu0 0.0
          %566 = vmatprep.subr.mxu0 0.0
          %567 = vmatpush2.msra.mxu0 0.0
          %568 = vmatprep.subr.mxu0 0.0
          %569 = vmatpush2.msra.mxu0 0.0
          %570 = vmatprep.subr.mxu0 0.0
          %571 = vmatpush2.msra.mxu0 0.0
          %572 = vmatprep.subr.mxu0 0.0
          %573 = vmatpush2.msra.mxu0 0.0
          %574 = vmatprep.subr.mxu0 0.0
          %575 = vmatpush2.msra.mxu0 0.0
          %576 = vmatprep.subr.mxu0 0.0
          %577 = vmatpush2.msra.mxu0 0.0
          %578 = vmatprep.mubr.f32.mxu0 0.0
          %579 = vmatmul.mubr.f32.gmra.mxu0 %v512
          %v580 = vpop.f32.mrf.mxu0
          %v581 = vadd.f32 %v509, %v580
          %v582 = vpop.f32.mrf.mxu0
          %583 = vdwg.mxu0
          %v584 = vmax.f32 %v581, 0.0
          %s585 = scalar_lea.vmem [#allocation6], 32
          %v586 = vld [vmem:[%s585] sm:$0xff]
          %v587 = vld [vmem:[%s585 + $0x8] sm:$0xff]
          %v588 = vld [vmem:[%s585 + $0x10] sm:$0xff]
          %v589 = vld [vmem:[%s585 + $0x18] sm:$0xff]
          %s590 = scalar_lea.vmem %s3, 1
          %v591 = vld [vmem:[%s590] sm:$0x1]
          %592 = vmatprep.subr.mxu0 0.0
          %593 = vmatpush1.msra.mxu0 0.0
          %594 = vmatprep.subr.mxu0 0.0
          %595 = vmatpush1.msra.mxu0 0.0
          %596 = vmatprep.subr.mxu0 0.0
          %597 = vmatpush1.msra.mxu0 0.0
          %598 = vmatprep.subr.mxu0 0.0
          %599 = vmatpush1.msra.mxu0 0.0
          %600 = vmatprep.subr.mxu0 0.0
          %601 = vmatpush1.msra.mxu0 0.0
          %602 = vmatprep.subr.mxu0 0.0
          %603 = vmatpush1.msra.mxu0 0.0
          %604 = vmatprep.subr.mxu0 0.0
          %605 = vmatpush1.msra.mxu0 0.0
          %606 = vmatprep.subr.mxu0 0.0
          %607 = vmatpush1.msra.mxu0 0.0
          %608 = vmatprep.subr.mxu0 0.0
          %609 = vmatpush1.msra.mxu0 0.0
          %610 = vmatprep.subr.mxu0 0.0
          %611 = vmatpush1.msra.mxu0 0.0
          %612 = vmatprep.subr.mxu0 0.0
          %613 = vmatpush1.msra.mxu0 0.0
          %614 = vmatprep.subr.mxu0 0.0
          %615 = vmatpush1.msra.mxu0 0.0
          %616 = vmatprep.subr.mxu0 0.0
          %617 = vmatpush1.msra.mxu0 %v589
          %618 = vmatprep.subr.mxu0 0.0
          %619 = vmatpush1.msra.mxu0 %v588
          %620 = vmatprep.subr.mxu0 0.0
          %621 = vmatpush1.msra.mxu0 %v587
          %622 = vmatprep.subr.mxu0 0.0
          %623 = vmatpush1.msra.mxu0 %v586
          %624 = vmatprep.subr.mxu0 0.0
          %625 = vmatpush2.msra.mxu0 0.0
          %626 = vmatprep.subr.mxu0 0.0
          %627 = vmatpush2.msra.mxu0 0.0
          %628 = vmatprep.subr.mxu0 0.0
          %629 = vmatpush2.msra.mxu0 0.0
          %630 = vmatprep.subr.mxu0 0.0
          %631 = vmatpush2.msra.mxu0 0.0
          %632 = vmatprep.subr.mxu0 0.0
          %633 = vmatpush2.msra.mxu0 0.0
          %634 = vmatprep.subr.mxu0 0.0
          %635 = vmatpush2.msra.mxu0 0.0
          %636 = vmatprep.subr.mxu0 0.0
          %637 = vmatpush2.msra.mxu0 0.0
          %638 = vmatprep.subr.mxu0 0.0
          %639 = vmatpush2.msra.mxu0 0.0
          %640 = vmatprep.subr.mxu0 0.0
          %641 = vmatpush2.msra.mxu0 0.0
          %642 = vmatprep.subr.mxu0 0.0
          %643 = vmatpush2.msra.mxu0 0.0
          %644 = vmatprep.subr.mxu0 0.0
          %645 = vmatpush2.msra.mxu0 0.0
          %646 = vmatprep.subr.mxu0 0.0
          %647 = vmatpush2.msra.mxu0 0.0
          %648 = vmatprep.subr.mxu0 0.0
          %649 = vmatpush2.msra.mxu0 0.0
          %650 = vmatprep.subr.mxu0 0.0
          %651 = vmatpush2.msra.mxu0 0.0
          %652 = vmatprep.subr.mxu0 0.0
          %653 = vmatpush2.msra.mxu0 0.0
          %654 = vmatprep.subr.mxu0 0.0
          %655 = vmatpush2.msra.mxu0 0.0
          %656 = vmatprep.mubr.f32.mxu0 0.0
          %657 = vmatmul.mubr.f32.gmra.mxu0 %v512
          %v658 = vpop.f32.mrf.mxu0
          %v659 = vadd.f32 %v591, %v658
          %v660 = vpop.f32.mrf.mxu0
          %661 = vdwg.mxu0
          %v662 = vmax.f32 %v659, 0.0
          %s663 = scalar_lea.vmem [#allocation6], 64
          %v664 = vld [vmem:[%s663] sm:$0xff]
          %v665 = vld [vmem:[%s663 + $0x8] sm:$0xff]
          %v666 = vld [vmem:[%s663 + $0x10] sm:$0xff]
          %v667 = vld [vmem:[%s663 + $0x18] sm:$0xff]
          %s668 = scalar_lea.vmem %s3, 2
          %v669 = vld [vmem:[%s668] sm:$0x1]
          %670 = vmatprep.subr.mxu0 0.0
          %671 = vmatpush1.msra.mxu0 0.0
          %672 = vmatprep.subr.mxu0 0.0
          %673 = vmatpush1.msra.mxu0 0.0
          %674 = vmatprep.subr.mxu0 0.0
          %675 = vmatpush1.msra.mxu0 0.0
          %676 = vmatprep.subr.mxu0 0.0
          %677 = vmatpush1.msra.mxu0 0.0
          %678 = vmatprep.subr.mxu0 0.0
          %679 = vmatpush1.msra.mxu0 0.0
          %680 = vmatprep.subr.mxu0 0.0
          %681 = vmatpush1.msra.mxu0 0.0
          %682 = vmatprep.subr.mxu0 0.0
          %683 = vmatpush1.msra.mxu0 0.0
          %684 = vmatprep.subr.mxu0 0.0
          %685 = vmatpush1.msra.mxu0 0.0
          %686 = vmatprep.subr.mxu0 0.0
          %687 = vmatpush1.msra.mxu0 0.0
          %688 = vmatprep.subr.mxu0 0.0
          %689 = vmatpush1.msra.mxu0 0.0
          %690 = vmatprep.subr.mxu0 0.0
          %691 = vmatpush1.msra.mxu0 0.0
          %692 = vmatprep.subr.mxu0 0.0
          %693 = vmatpush1.msra.mxu0 0.0
          %694 = vmatprep.subr.mxu0 0.0
          %695 = vmatpush1.msra.mxu0 %v667
          %696 = vmatprep.subr.mxu0 0.0
          %697 = vmatpush1.msra.mxu0 %v666
          %698 = vmatprep.subr.mxu0 0.0
          %699 = vmatpush1.msra.mxu0 %v665
          %700 = vmatprep.subr.mxu0 0.0
          %701 = vmatpush1.msra.mxu0 %v664
          %702 = vmatprep.subr.mxu0 0.0
          %703 = vmatpush2.msra.mxu0 0.0
          %704 = vmatprep.subr.mxu0 0.0
          %705 = vmatpush2.msra.mxu0 0.0
          %706 = vmatprep.subr.mxu0 0.0
          %707 = vmatpush2.msra.mxu0 0.0
          %708 = vmatprep.subr.mxu0 0.0
          %709 = vmatpush2.msra.mxu0 0.0
          %710 = vmatprep.subr.mxu0 0.0
          %711 = vmatpush2.msra.mxu0 0.0
          %712 = vmatprep.subr.mxu0 0.0
          %713 = vmatpush2.msra.mxu0 0.0
          %714 = vmatprep.subr.mxu0 0.0
          %715 = vmatpush2.msra.mxu0 0.0
          %716 = vmatprep.subr.mxu0 0.0
          %717 = vmatpush2.msra.mxu0 0.0
          %718 = vmatprep.subr.mxu0 0.0
          %719 = vmatpush2.msra.mxu0 0.0
          %720 = vmatprep.subr.mxu0 0.0
          %721 = vmatpush2.msra.mxu0 0.0
          %722 = vmatprep.subr.mxu0 0.0
          %723 = vmatpush2.msra.mxu0 0.0
          %724 = vmatprep.subr.mxu0 0.0
          %725 = vmatpush2.msra.mxu0 0.0
          %726 = vmatprep.subr.mxu0 0.0
          %727 = vmatpush2.msra.mxu0 0.0
          %728 = vmatprep.subr.mxu0 0.0
          %729 = vmatpush2.msra.mxu0 0.0
          %730 = vmatprep.subr.mxu0 0.0
          %731 = vmatpush2.msra.mxu0 0.0
          %732 = vmatprep.subr.mxu0 0.0
          %733 = vmatpush2.msra.mxu0 0.0
          %734 = vmatprep.mubr.f32.mxu0 0.0
          %735 = vmatmul.mubr.f32.gmra.mxu0 %v512
          %v736 = vpop.f32.mrf.mxu0
          %v737 = vadd.f32 %v669, %v736
          %v738 = vpop.f32.mrf.mxu0
          %739 = vdwg.mxu0
          %v740 = vmax.f32 %v737, 0.0
          %v741 = vadd.f32 %v584, %v662
          %v742 = vadd.f32 %v741, %v740
          %v743 = vld [vmem:[%s4] sm:$0xff]
          %v744 = vld [vmem:[%s4 + $0x8] sm:$0xff]
          %v745 = vld [vmem:[%s4 + $0x10] sm:$0xff]
          %v746 = vld [vmem:[%s4 + $0x18] sm:$0xff]
          %v747 = vld [vmem:[%s5] sm:$0x1]
          %v749 = vsel %vm510, %v742, 0
          %751 = vmatprep.subr.mxu0 0.0
          %752 = vmatpush1.msra.mxu0 0.0
          %753 = vmatprep.subr.mxu0 0.0
          %754 = vmatpush1.msra.mxu0 0.0
          %755 = vmatprep.subr.mxu0 0.0
          %756 = vmatpush1.msra.mxu0 0.0
          %757 = vmatprep.subr.mxu0 0.0
          %758 = vmatpush1.msra.mxu0 0.0
          %759 = vmatprep.subr.mxu0 0.0
          %760 = vmatpush1.msra.mxu0 0.0
          %761 = vmatprep.subr.mxu0 0.0
          %762 = vmatpush1.msra.mxu0 0.0
          %763 = vmatprep.subr.mxu0 0.0
          %764 = vmatpush1.msra.mxu0 0.0
          %765 = vmatprep.subr.mxu0 0.0
          %766 = vmatpush1.msra.mxu0 0.0
          %767 = vmatprep.subr.mxu0 0.0
          %768 = vmatpush1.msra.mxu0 0.0
          %769 = vmatprep.subr.mxu0 0.0
          %770 = vmatpush1.msra.mxu0 0.0
          %771 = vmatprep.subr.mxu0 0.0
          %772 = vmatpush1.msra.mxu0 0.0
          %773 = vmatprep.subr.mxu0 0.0
          %774 = vmatpush1.msra.mxu0 0.0
          %775 = vmatprep.subr.mxu0 0.0
          %776 = vmatpush1.msra.mxu0 %v746
          %777 = vmatprep.subr.mxu0 0.0
          %778 = vmatpush1.msra.mxu0 %v745
          %779 = vmatprep.subr.mxu0 0.0
          %780 = vmatpush1.msra.mxu0 %v744
          %781 = vmatprep.subr.mxu0 0.0
          %782 = vmatpush1.msra.mxu0 %v743
          %783 = vmatprep.subr.mxu0 0.0
          %784 = vmatpush2.msra.mxu0 0.0
          %785 = vmatprep.subr.mxu0 0.0
          %786 = vmatpush2.msra.mxu0 0.0
          %787 = vmatprep.subr.mxu0 0.0
          %788 = vmatpush2.msra.mxu0 0.0
          %789 = vmatprep.subr.mxu0 0.0
          %790 = vmatpush2.msra.mxu0 0.0
          %791 = vmatprep.subr.mxu0 0.0
          %792 = vmatpush2.msra.mxu0 0.0
          %793 = vmatprep.subr.mxu0 0.0
          %794 = vmatpush2.msra.mxu0 0.0
          %795 = vmatprep.subr.mxu0 0.0
          %796 = vmatpush2.msra.mxu0 0.0
          %797 = vmatprep.subr.mxu0 0.0
          %798 = vmatpush2.msra.mxu0 0.0
          %799 = vmatprep.subr.mxu0 0.0
          %800 = vmatpush2.msra.mxu0 0.0
          %801 = vmatprep.subr.mxu0 0.0
          %802 = vmatpush2.msra.mxu0 0.0
          %803 = vmatprep.subr.mxu0 0.0
          %804 = vmatpush2.msra.mxu0 0.0
          %805 = vmatprep.subr.mxu0 0.0
          %806 = vmatpush2.msra.mxu0 0.0
          %807 = vmatprep.subr.mxu0 0.0
          %808 = vmatpush2.msra.mxu0 0.0
          %809 = vmatprep.subr.mxu0 0.0
          %810 = vmatpush2.msra.mxu0 0.0
          %811 = vmatprep.subr.mxu0 0.0
          %812 = vmatpush2.msra.mxu0 0.0
          %813 = vmatprep.subr.mxu0 0.0
          %814 = vmatpush2.msra.mxu0 0.0
          %815 = vmatprep.mubr.f32.mxu0 0.0
          %816 = vmatmul.mubr.f32.gmra.mxu0 %v749
          %v817 = vpop.f32.mrf.mxu0
          %v818 = vadd.f32 %v747, %v817
          %v819 = vpop.f32.mrf.mxu0
          %820 = vdwg.mxu0
          %821 = vst [vmem:[%s297] sm:$0x1] %v818
        $region60: #{tpu_custom_call.1} parent=43 // pred_fallthru
          _
        %s822 = sand.u32 %s177, 1
        %s823 = scalar_lea.sflag [#allocation5], %s822
        %s824 = sand.u32 %s177, 1
        %s825 = scalar_lea.vmem [#allocation8], %s824
        // Predicated region
        $region61: #{tpu_custom_call.1} parent=43 // pred_check
          %p826 = pneg %p187
        $region62: #{tpu_custom_call.1} parent=43 // pred_check_branch
          %828 = sbr.rel (%p826) target = $region64
        $region63: #{tpu_custom_call.1} parent=43 // pred_region
          %s830 = ssub.s32 16, 16
          %831 = vsyncadd %s823, %s830
          %s832 = smul.addr %s28, 16
          %s833 = scalar_lea.hbm %s6, %s832
          %s835 = sshll.u32 %s825, 4
          %s836 = int_to_ptr.vmem [resolvable:$true] %s835
          %838 = dma.vmem_to_hbm [thread:$0]  %s836, 16, %s833, %s823
        $region64: #{tpu_custom_call.1} parent=43 // pred_fallthru
          _
      $region44: #{tpu_custom_call.1} parent=5 // pred_fallthru
        _
      %p839 = scmp.le.s32.totalorder 2, %s19
      // Predicated region
      $region65: #{tpu_custom_call.1} parent=5 // pred_check
        %p840 = pneg %p839
      $region66: #{tpu_custom_call.1} parent=5 // pred_check_branch
        %842 = sbr.rel (%p840) target = $region68
      $region67: #{tpu_custom_call.1} parent=5 // pred_region
        %s843 = ssub.s32 %s19, 2
        // Predicated region
        $region69: #{tpu_custom_call.1} parent=67 // pred_check
          %p844 = pneg %p193
        $region70: #{tpu_custom_call.1} parent=67 // pred_check_branch
          %846 = sbr.rel (%p844) target = $region72
        $region71: #{tpu_custom_call.1} parent=67 // pred_region
          %s847 = sand.u32 %s178, 1
          %s848 = scalar_lea.sflag [#allocation5], %s847
          %s849 = sand.u32 %s178, 1
          %s850 = scalar_lea.vmem [#allocation8], %s849
          %851 = dma.done %s848, 16
        $region72: #{tpu_custom_call.1} parent=67 // pred_fallthru
          _
      $region68: #{tpu_custom_call.1} parent=5 // pred_fallthru
        _
    $region6: #{tpu_custom_call.1} parent=1 // loop_footer
      %s23 = sadd.s32 1, %s19
    $region7: #{tpu_custom_call.1} parent=1 // loop_footer_branch
      %18 = sbr.rel target = $region3
    $region8: #{tpu_custom_call.1} parent=1 // loop_exit
      _
    %852 = vsyncpa [#allocation4], 1
    %s853 = scalar_lea.sflag [#allocation4], 1
    %854 = vsyncpa %s853, 1
    %855 = vsyncpa [#allocation7], 1
    %856 = vsyncpa [#allocation5], 1
    %s857 = scalar_lea.sflag [#allocation5], 1
    %858 = vsyncpa %s857, 1

</llo_original>
